<compile_context>
chip_gen: v7x
topology: tpu7x:2x2x1
jax: 0.10.0
libtpu: 0.0.40
codegen_flags: <defaults>
</compile_context>

<pallas_src>
import jax
import jax.numpy as jnp
from jax import lax
from jax.experimental import pallas as pl
from jax.experimental.pallas import tpu as pltpu


# ----------------------------------------------------------------------------
# Pallas kernels
# ----------------------------------------------------------------------------
def _fusion_kernel_batched(ordr_ref, ordl_ref, x_ref, adj_ref, xo_ref, adjo_ref):
    """General path: x_out = e @ x ; adj_out = e @ adj @ e^T   (fully batched)."""
    bb, N, _ = adj_ref.shape

    # e[b,j,k] = (k == order[b,j]) — built in-kernel, never hits HBM.
    k_ids = lax.broadcasted_iota(jnp.int32, (bb, N, N), 2)
    mask_e = k_ids == ordr_ref[...]                       # (bb,N,N) vs (bb,N,1)
    e_a = mask_e.astype(adj_ref.dtype)                    # cast once, reused
    e_x = e_a if x_ref.dtype == adj_ref.dtype else mask_e.astype(x_ref.dtype)

    # x_out = e @ x
    xo_ref[...] = jnp.einsum("bjk,bkd->bjd", e_x, x_ref[...],
                             preferred_element_type=xo_ref.dtype)

    # t = e @ adj (row permutation), kept in adj.dtype (exact: pure selection).
    t = jnp.einsum("bjk,bkm->bjm", e_a, adj_ref[...],
                   preferred_element_type=adj_ref.dtype)

    # e^T[b,m,c] = (m == order[b,c]) from the lane-layout order copy
    # -> canonical 'bjm,bmc->bjc' contraction (no minor-dim contraction / transpose).
    m_ids = lax.broadcasted_iota(jnp.int32, (bb, N, N), 1)
    e_t = (m_ids == ordl_ref[...]).astype(adj_ref.dtype)  # (bb,N,N) vs (bb,1,N)
    adjo_ref[...] = jnp.einsum("bjm,bmc->bjc", t, e_t,
                               preferred_element_type=adjo_ref.dtype)


def _fusion_kernel_collapsed(ordbd_ref, ordr_ref, ordl_ref, xf_ref, adj_ref,
                             xo_ref, adjo_ref):
    """Small-graph fast path: the x permutation of the whole batch block is ONE
    block-diagonal (bb*N, bb*N) @ (bb*N, D) matmul on a lane-dense slab; the adj path
    stays batched (same structure as the general kernel)."""
    BN = xf_ref.shape[0]
    bb, N, _ = adj_ref.shape

    # Block-diagonal permutation: E[r,c] = (c == order[b,j] + b_local*N), r = b_local*N+j.
    col = lax.broadcasted_iota(jnp.int32, (BN, BN), 1)
    E = (col == ordbd_ref[...]).astype(xf_ref.dtype)      # (BN,BN) vs (BN,1), one cast
    xo_ref[...] = jnp.dot(E, xf_ref[...], preferred_element_type=xo_ref.dtype)

    # adj_out = e @ adj @ e^T, all in adj.dtype (exact selection).
    k_ids = lax.broadcasted_iota(jnp.int32, (bb, N, N), 2)
    e = (k_ids == ordr_ref[...]).astype(adj_ref.dtype)
    t = jnp.einsum("bjk,bkm->bjm", e, adj_ref[...],
                   preferred_element_type=adj_ref.dtype)
    m_ids = lax.broadcasted_iota(jnp.int32, (bb, N, N), 1)
    e_t = (m_ids == ordl_ref[...]).astype(adj_ref.dtype)
    adjo_ref[...] = jnp.einsum("bjm,bmc->bjc", t, e_t,
                               preferred_element_type=adjo_ref.dtype)


# ----------------------------------------------------------------------------
# Wrapper
# ----------------------------------------------------------------------------
def _physical_vmem_bytes():
    """Per-TensorCore VMEM (128 MiB v5e/v6e, 64 MiB v7x); conservative fallback."""
    try:
        info = pltpu.get_tpu_info()
        v = getattr(info, "vmem_capacity_bytes", None)
        if v:
            return int(v)
    except Exception:
        pass
    return 64 << 20


def apply_fusion(order, x, adj):
    """order: (B,N) int, x: (B,N,D), adj: (B,N,N) -> (e@x, e@adj@e^T)."""
    B, N, D = x.shape
    assert adj.shape == (B, N, N) and tuple(order.shape) == (B, N)
    ix = jnp.dtype(x.dtype).itemsize
    ia = jnp.dtype(adj.dtype).itemsize

    phys = _physical_vmem_bytes()
    step_budget = min(phys // 2, 48 << 20)        # ~48 MiB v5e/v6e, ~32 MiB v7x
    vmem_limit = min((phys * 3) // 4, 100 << 20)  # raised scoped limit, Mosaic headroom left

    # Small-graph fast path (block-diagonal batch collapse for the x matmul).
    collapsed = (N % 8 == 0) and (N <= 256)

    # Batch-block size: biggest block in budget, capped so the grid keeps >=2 (>=4 for
    # larger B) parallel steps (v7x dual-TensorCore sharding; harmless elsewhere).
    if B >= 8:
        bb_cap = pl.cdiv(B, 4)
    elif B >= 4:
        bb_cap = pl.cdiv(B, 2)
    else:
        bb_cap = B
    if collapsed:
        bb_cap = min(bb_cap, max(1, 1024 // N))   # bound (bb*N)^2 block-diag cost

    def step_bytes(bbc):
        io = bbc * N * (D * ix + N * ia) * 2 + bbc * N * 12         # in+out blocks + order
        tmp = bbc * N * N * (2 * ia + 4) + bbc * N * D * ix         # e, e^T, t, bool mask
        if collapsed:
            tmp += (bbc * N) * (bbc * N) * (ix + 4)                 # block-diag E (+mask)
        return 2 * io + tmp                                         # x2: double buffering

    bb = 1
    for cand in range(bb_cap, 0, -1):             # bb need NOT divide B (cdiv grid below)
        if step_bytes(cand) <= step_budget:
            bb = cand
            break
    if step_bytes(1) > step_budget:
        # Single-graph block is already large: raise the scoped VMEM limit explicitly
        # instead of silently overflowing the 16/32 MiB default.
        vmem_limit = min(int(phys * 0.9), max(vmem_limit, int(step_bytes(1) * 1.25)))
        # TODO(synk): contraction-axis (N) tiling with a pl.when-initialized f32
        # accumulator for graphs where even bb=1 exceeds per-TensorCore VMEM.

    steps = pl.cdiv(B, bb)
    Bpad = steps * bb

    order = order.astype(jnp.int32)
    if Bpad != B:
        pad = Bpad - B
        order = jnp.pad(order, ((0, pad), (0, 0)))
        x = jnp.pad(x, ((0, pad), (0, 0), (0, 0)))
        adj = jnp.pad(adj, ((0, pad), (0, 0), (0, 0)))

    ord_rows = order.reshape(Bpad, N, 1)          # sublane layout  -> builds e
    ord_lanes = order.reshape(Bpad, 1, N)         # lane layout     -> builds e^T

    params = pltpu.CompilerParams(
        dimension_semantics=("parallel",),
        vmem_limit_bytes=int(vmem_limit),
    )
    bytes_accessed = Bpad * (2 * N * (N * ia + D * ix) + 3 * N * 4)

    if collapsed:
        loc = (jnp.arange(Bpad, dtype=jnp.int32) % bb) * N
        ord_bd = (order + loc[:, None]).reshape(Bpad * N, 1)
        x_flat = x.reshape(Bpad * N, D)           # lane-dense slab (free reshape in HBM)

        cost = pl.CostEstimate(
            flops=int(steps * (2 * (bb * N) ** 2 * D + 4 * bb * N ** 3)),
            transcendentals=0,
            bytes_accessed=int(bytes_accessed),
        )
        xo, adjo = pl.pallas_call(
            _fusion_kernel_collapsed,
            out_shape=(
                jax.ShapeDtypeStruct((Bpad * N, D), x.dtype),
                jax.ShapeDtypeStruct((Bpad, N, N), adj.dtype),
            ),
            grid_spec=pltpu.PrefetchScalarGridSpec(
                num_scalar_prefetch=0,
                grid=(steps,),
                in_specs=[
                    pl.BlockSpec((bb * N, 1), lambda i: (i, 0)),      # ord_bd
                    pl.BlockSpec((bb, N, 1), lambda i: (i, 0, 0)),    # ord_rows
                    pl.BlockSpec((bb, 1, N), lambda i: (i, 0, 0)),    # ord_lanes
                    pl.BlockSpec((bb * N, D), lambda i: (i, 0)),      # x (flat slab)
                    pl.BlockSpec((bb, N, N), lambda i: (i, 0, 0)),    # adj
                ],
                out_specs=[
                    pl.BlockSpec((bb * N, D), lambda i: (i, 0)),      # x_out (flat slab)
                    pl.BlockSpec((bb, N, N), lambda i: (i, 0, 0)),    # adj_out
                ],
            ),
            compiler_params=params,
            cost_estimate=cost,
        )(ord_bd, ord_rows, ord_lanes, x_flat, adj)
        xo = xo.reshape(Bpad, N, D)
    else:
        cost = pl.CostEstimate(
            flops=int(Bpad * (2 * N * N * D + 4 * N ** 3)),
            transcendentals=0,
            bytes_accessed=int(bytes_accessed),
        )
        xo, adjo = pl.pallas_call(
            _fusion_kernel_batched,
            out_shape=(
                jax.ShapeDtypeStruct((Bpad, N, D), x.dtype),
                jax.ShapeDtypeStruct((Bpad, N, N), adj.dtype),
            ),
            grid_spec=pltpu.PrefetchScalarGridSpec(
                num_scalar_prefetch=0,
                grid=(steps,),
                in_specs=[
                    pl.BlockSpec((bb, N, 1), lambda i: (i, 0, 0)),    # ord_rows
                    pl.BlockSpec((bb, 1, N), lambda i: (i, 0, 0)),    # ord_lanes
                    pl.BlockSpec((bb, N, D), lambda i: (i, 0, 0)),    # x
                    pl.BlockSpec((bb, N, N), lambda i: (i, 0, 0)),    # adj
                ],
                out_specs=[
                    pl.BlockSpec((bb, N, D), lambda i: (i, 0, 0)),    # x_out
                    pl.BlockSpec((bb, N, N), lambda i: (i, 0, 0)),    # adj_out
                ],
            ),
            compiler_params=params,
            cost_estimate=cost,
        )(ord_rows, ord_lanes, x, adj)

    if Bpad != B:
        xo = xo[:B]
        adjo = adjo[:B]
    return xo, adjo


# ----------------------------------------------------------------------------
# PageRank ordering replicated in plain JAX (graph glue, not the kernel hot path)
# ----------------------------------------------------------------------------
def _build_nx_weights(adj, thresh=0.6):
    """Symmetric weighted adjacency exactly as produced by nx.Graph() built from
    row-major (adj >= 0.6).nonzero(): for a pair {i,j} the later (lower-tri) entry wins."""
    N = adj.shape[0]
    ii = jnp.arange(N)[:, None]
    jj = jnp.arange(N)[None, :]
    ge = ii >= jj
    mask = adj >= thresh
    low_w = jnp.where(ge, adj, adj.T)          # adj[max(i,j), min(i,j)]
    up_w = jnp.where(ge, adj.T, adj)           # adj[min(i,j), max(i,j)]
    low_m = jnp.where(ge, mask, mask.T)
    up_m = jnp.where(ge, mask.T, mask)
    return jnp.where(low_m, low_w, jnp.where(up_m, up_w, 0.0))


def _pagerank(W, nstart, alpha=0.85, tol=1e-3, max_iter=100):
    """networkx-style PageRank power iteration with early-stop semantics."""
    N = W.shape[0]
    S = W.sum(axis=1)
    deg_inv = jnp.where(S > 0, 1.0 / jnp.where(S > 0, S, 1.0), 0.0)
    P = deg_inv[:, None] * W                   # row-stochastic transition matrix
    dangling = (S == 0).astype(W.dtype)
    p = jnp.full((N,), 1.0 / N, dtype=W.dtype)
    x0 = nstart / nstart.sum()

    def body(_, carry):
        xv, done = carry
        xnew = alpha * (xv @ P + jnp.sum(xv * dangling) * p) + (1.0 - alpha) * p
        err = jnp.abs(xnew - xv).sum()
        x_out = jnp.where(done, xv, xnew)
        done_out = jnp.logical_or(done, err < N * tol)
        return x_out, done_out

    xv, _ = jax.lax.fori_loop(0, max_iter, body, (x0, jnp.array(False)))
    # TODO(synk): networkx raises PowerIterationFailedConvergence when max_iter is
    # exhausted; here we simply return the last iterate.
    return xv


def pagerank_order(x, adj):
    """x: (B,N,D), adj: (B,N,N) -> (B,N) int32 node ordering (descending PageRank)."""
    nstart = x.sum(axis=2)                     # == x.sum(dim=2) in torch

    def single(adj_b, nstart_b):
        W = _build_nx_weights(adj_b)
        pr = _pagerank(W, nstart_b)
        return jnp.argsort(-pr, stable=True).astype(jnp.int32)  # ties keep node order

    return jax.vmap(single)(adj.astype(jnp.float32), nstart.astype(jnp.float32))


# ----------------------------------------------------------------------------
# Fusion_block
# ----------------------------------------------------------------------------
class FusionBlock:
    def __init__(self, fusion_model, batch_size, num_nodes, key):
        self.fusion_model = fusion_model
        k1, k2, k3 = jax.random.split(key, 3)
        # Parameters kept for parity with the PyTorch module; the 'pagerank' forward
        # path never uses them (exactly as in torch).
        self.e1_L = jax.random.normal(k1, (batch_size, num_nodes, num_nodes), jnp.float32)
        self.e2_L = jax.random.normal(k2, (batch_size, num_nodes, num_nodes), jnp.float32)
        self.e3_L = jax.random.normal(k3, (batch_size, num_nodes, num_nodes), jnp.float32)

    def __call__(self, x1, adj1, x3, adj3):
        if self.fusion_model == "pagerank":
            order1 = pagerank_order(x1, adj1)
            x1, adj1 = apply_fusion(order1, x1, adj1)
            order3 = pagerank_order(x3, adj3)
            x3, adj3 = apply_fusion(order3, x3, adj3)
        return x1, adj1, x3, adj3


if __name__ == "__main__":
    key = jax.random.PRNGKey(0)
    kp, k1, k2, k3, k4, k5, k6 = jax.random.split(key, 7)

    # --- demo 1: tiny graphs (collapsed fast path, single grid step) ---------
    B, N, D = 2, 8, 16
    x1 = jax.random.uniform(k1, (B, N, D), jnp.float32) + 0.1   # positive nstart
    adj1 = jax.random.uniform(k2, (B, N, N), jnp.float32)       # some edges >= 0.6
    x3 = jax.random.uniform(k3, (B, N, D), jnp.float32) + 0.1
    adj3 = jax.random.uniform(k4, (B, N, N), jnp.float32)

    block = FusionBlock("pagerank", B, N, kp)
    x1o, adj1o, x3o, adj3o = block(x1, adj1, x3, adj3)
    jax.block_until_ready((x1o, adj1o, x3o, adj3o))
    assert x1o.shape == (B, N, D) and adj1o.shape == (B, N, N)
    assert x3o.shape == (B, N, D) and adj3o.shape == (B, N, N)

    order1 = pagerank_order(x1, adj1)
    ref_x = jax.vmap(lambda xx, oo: xx[oo, :])(x1, order1)
    ref_adj = jax.vmap(lambda aa, oo: aa[oo][:, oo])(adj1, order1)
    assert jnp.allclose(x1o, ref_x, atol=1e-6)
    assert jnp.allclose(adj1o, ref_adj, atol=1e-6)

    # --- demo 2: general batched path, non-divisor batch block (padding) -----
    B2, N2, D2 = 5, 10, 16
    xb = jax.random.uniform(k5, (B2, N2, D2), jnp.float32) + 0.1
    adjb = jax.random.uniform(k6, (B2, N2, N2), jnp.float32)
    orderb = pagerank_order(xb, adjb)
    xbo, adjbo = apply_fusion(orderb, xb, adjb)
    jax.block_until_ready((xbo, adjbo))
    ref_xb = jax.vmap(lambda xx, oo: xx[oo, :])(xb, orderb)
    ref_adjb = jax.vmap(lambda aa, oo: aa[oo][:, oo])(adjb, orderb)
    assert xbo.shape == (B2, N2, D2) and adjbo.shape == (B2, N2, N2)
    assert jnp.allclose(xbo, ref_xb, atol=1e-6)
    assert jnp.allclose(adjbo, ref_adjb, atol=1e-6)

    print("KERNEL_OK")
</pallas_src>

<mosaic_0001>
module attributes {stable_mosaic.version = 11 : i64} {
  func.func @_fusion_kernel_collapsed(%arg0: i32, %arg1: memref<16x1xi32, #tpu.memory_space<vmem>>, %arg2: memref<2x8x1xi32, #tpu.memory_space<vmem>>, %arg3: memref<2x1x8xi32, #tpu.memory_space<vmem>>, %arg4: memref<16x16xf32, #tpu.memory_space<vmem>>, %arg5: memref<2x8x8xf32, #tpu.memory_space<vmem>>, %arg6: memref<16x16xf32, #tpu.memory_space<vmem>>, %arg7: memref<2x8x8xf32, #tpu.memory_space<vmem>>) attributes {dimension_semantics = [#tpu.dimension_semantics<parallel>], iteration_bounds = array<i64: 1>, scalar_prefetch = 0 : i64, scratch_operands = 0 : i64, tpu.core_type = #tpu.core_type<tc>, window_params = [{transform_indices = @transform_0, window_bounds = array<i64: 16, 1>}, {transform_indices = @transform_1, window_bounds = array<i64: 2, 8, 1>}, {transform_indices = @transform_2, window_bounds = array<i64: 2, 1, 8>}, {transform_indices = @transform_3, window_bounds = array<i64: 16, 16>}, {transform_indices = @transform_4, window_bounds = array<i64: 2, 8, 8>}, {transform_indices = @transform_5, window_bounds = array<i64: 16, 16>}, {transform_indices = @transform_6, window_bounds = array<i64: 2, 8, 8>}]} {
    %0 = tpu.iota {dimensions = array<i32: 1>} : vector<16x16xi32>
    %c0 = arith.constant 0 : index
    %c0_0 = arith.constant 0 : index
    %1 = vector.load %arg1[%c0, %c0_0] : memref<16x1xi32, #tpu.memory_space<vmem>>, vector<16x1xi32>
    %2 = vector.broadcast %1 : vector<16x1xi32> to vector<16x16xi32>
    %3 = arith.cmpi eq, %0, %2 : vector<16x16xi32>
    %4 = arith.extui %3 : vector<16x16xi1> to vector<16x16xi32>
    %5 = arith.sitofp %4 : vector<16x16xi32> to vector<16x16xf32>
    %c0_1 = arith.constant 0 : index
    %c0_2 = arith.constant 0 : index
    %6 = vector.load %arg4[%c0_1, %c0_2] : memref<16x16xf32, #tpu.memory_space<vmem>>, vector<16x16xf32>
    %cst = arith.constant dense<0.000000e+00> : vector<16x16xf32>
    %7 = tpu.matmul %5, %6, %cst {dimension_numbers = #tpu.dot_dimension_numbers<[1], [0], [0], [1], [0, 0, 1, 1], [], []>} : vector<16x16xf32>, vector<16x16xf32>, vector<16x16xf32> -> vector<16x16xf32>
    %c0_3 = arith.constant 0 : index
    %c0_4 = arith.constant 0 : index
    %8 = vector.load %arg6[%c0_3, %c0_4] : memref<16x16xf32, #tpu.memory_space<vmem>>, vector<16x16xf32>
    tpu.vector_store %arg6[%c0_3, %c0_4], %7 {strides = array<i32>} : memref<16x16xf32, #tpu.memory_space<vmem>>, vector<16x16xf32>,
    %9 = tpu.iota {dimensions = array<i32: 2>} : vector<2x8x8xi32>
    %c0_5 = arith.constant 0 : index
    %c0_6 = arith.constant 0 : index
    %c0_7 = arith.constant 0 : index
    %10 = vector.load %arg2[%c0_5, %c0_6, %c0_7] : memref<2x8x1xi32, #tpu.memory_space<vmem>>, vector<2x8x1xi32>
    %11 = vector.broadcast %10 : vector<2x8x1xi32> to vector<2x8x8xi32>
    %12 = arith.cmpi eq, %9, %11 : vector<2x8x8xi32>
    %13 = arith.extui %12 : vector<2x8x8xi1> to vector<2x8x8xi32>
    %14 = arith.sitofp %13 : vector<2x8x8xi32> to vector<2x8x8xf32>
    %c0_8 = arith.constant 0 : index
    %c0_9 = arith.constant 0 : index
    %c0_10 = arith.constant 0 : index
    %15 = vector.load %arg5[%c0_8, %c0_9, %c0_10] : memref<2x8x8xf32, #tpu.memory_space<vmem>>, vector<2x8x8xf32>
    "tpu.trace_start"() <{level = 10 : i32, message = "bjk,bkm->bjm"}> : () -> ()
    %cst_11 = arith.constant dense<0.000000e+00> : vector<2x8x8xf32>
    %16 = tpu.matmul %14, %15, %cst_11 {dimension_numbers = #tpu.dot_dimension_numbers<[2], [1], [1], [2], [0, 0, 0, 1, 1, 2], [0], [0]>} : vector<2x8x8xf32>, vector<2x8x8xf32>, vector<2x8x8xf32> -> vector<2x8x8xf32>
    "tpu.trace_stop"() : () -> ()
    %17 = tpu.iota {dimensions = array<i32: 1>} : vector<2x8x8xi32>
    %c0_12 = arith.constant 0 : index
    %c0_13 = arith.constant 0 : index
    %c0_14 = arith.constant 0 : index
    %18 = vector.load %arg3[%c0_12, %c0_13, %c0_14] : memref<2x1x8xi32, #tpu.memory_space<vmem>>, vector<2x1x8xi32>
    %19 = vector.broadcast %18 : vector<2x1x8xi32> to vector<2x8x8xi32>
    %20 = arith.cmpi eq, %17, %19 : vector<2x8x8xi32>
    %21 = arith.extui %20 : vector<2x8x8xi1> to vector<2x8x8xi32>
    %22 = arith.sitofp %21 : vector<2x8x8xi32> to vector<2x8x8xf32>
    "tpu.trace_start"() <{level = 10 : i32, message = "bjm,bmc->bjc"}> : () -> ()
    %cst_15 = arith.constant dense<0.000000e+00> : vector<2x8x8xf32>
    %23 = tpu.matmul %16, %22, %cst_15 {dimension_numbers = #tpu.dot_dimension_numbers<[2], [1], [1], [2], [0, 0, 0, 1, 1, 2], [0], [0]>} : vector<2x8x8xf32>, vector<2x8x8xf32>, vector<2x8x8xf32> -> vector<2x8x8xf32>
    "tpu.trace_stop"() : () -> ()
    %c0_16 = arith.constant 0 : index
    %c0_17 = arith.constant 0 : index
    %c0_18 = arith.constant 0 : index
    %24 = vector.load %arg7[%c0_16, %c0_17, %c0_18] : memref<2x8x8xf32, #tpu.memory_space<vmem>>, vector<2x8x8xf32>
    tpu.vector_store %arg7[%c0_16, %c0_17, %c0_18], %23 {strides = array<i32>} : memref<2x8x8xf32, #tpu.memory_space<vmem>>, vector<2x8x8xf32>,
    return
  }
  func.func @transform_0(%arg0: i32) -> (i32, i32) {
    %c0_i32 = arith.constant 0 : i32
    %c0_i32_0 = arith.constant 0 : i32
    return %arg0, %c0_i32 : i32, i32
  }
  func.func @transform_1(%arg0: i32) -> (i32, i32, i32) {
    %c0_i32 = arith.constant 0 : i32
    %c0_i32_0 = arith.constant 0 : i32
    %c0_i32_1 = arith.constant 0 : i32
    return %arg0, %c0_i32, %c0_i32_0 : i32, i32, i32
  }
  func.func @transform_2(%arg0: i32) -> (i32, i32, i32) {
    %c0_i32 = arith.constant 0 : i32
    %c0_i32_0 = arith.constant 0 : i32
    %c0_i32_1 = arith.constant 0 : i32
    return %arg0, %c0_i32, %c0_i32_0 : i32, i32, i32
  }
  func.func @transform_3(%arg0: i32) -> (i32, i32) {
    %c0_i32 = arith.constant 0 : i32
    %c0_i32_0 = arith.constant 0 : i32
    return %arg0, %c0_i32 : i32, i32
  }
  func.func @transform_4(%arg0: i32) -> (i32, i32, i32) {
    %c0_i32 = arith.constant 0 : i32
    %c0_i32_0 = arith.constant 0 : i32
    %c0_i32_1 = arith.constant 0 : i32
    return %arg0, %c0_i32, %c0_i32_0 : i32, i32, i32
  }
  func.func @transform_5(%arg0: i32) -> (i32, i32) {
    %c0_i32 = arith.constant 0 : i32
    %c0_i32_0 = arith.constant 0 : i32
    return %arg0, %c0_i32 : i32, i32
  }
  func.func @transform_6(%arg0: i32) -> (i32, i32, i32) {
    %c0_i32 = arith.constant 0 : i32
    %c0_i32_0 = arith.constant 0 : i32
    %c0_i32_1 = arith.constant 0 : i32
    return %arg0, %c0_i32, %c0_i32_0 : i32, i32, i32
  }
}

</mosaic_0001>

<llo_original>
// kernel: tpu_custom_call.1
$region0: #{tpu_custom_call.1}
  #allocation0 [shape = 'u32[]', space=smem, size = 0x4, offset = 0x4, fixed_abs, tag = 'smem constant byte address 0x4 - core index']
  #allocation1 [shape = 'u32[144,128]{1,0:T(1,128)}', space=vmem, size = 0x12000, scoped, tag = 'internal scratch']
  %s0 = inlined_call_operand.vmem [shape: s32[16,1], index: 0, kind: input, shape index: {}]
  %s1 = inlined_call_operand.vmem [shape: s32[2,8,1], index: 1, kind: input, shape index: {}]
  %s2 = inlined_call_operand.vmem [shape: s32[2,1,8], index: 2, kind: input, shape index: {}]
  %s3 = inlined_call_operand.vmem [shape: f32[16,16], index: 3, kind: input, shape index: {}]
  %s4 = inlined_call_operand.vmem [shape: f32[2,8,8], index: 4, kind: input, shape index: {}]
  %s5 = inlined_call_operand.hbm [shape: f32[16,16], index: 5, kind: output, shape index: {0}]
  %s6 = inlined_call_operand.hbm [shape: f32[2,8,8], index: 6, kind: output, shape index: {1}]
  %7 = xla_tuple %s5, %s6
  %s8 = sld [smem:[#allocation0]]
  $region38: #{tpu_custom_call.1} parent=0
    _
  %s10 = ssub.s32 1, %s8
  %s11 = scalar_select 0, %s10, %s8
  $region1: #{tpu_custom_call.1} parent=0
    #allocation2 [shape = 'u8[8192]{0}', space=vmem, size = 0x2000, scoped, tag = 'output window, operand 0, single buffered']
    #allocation3 [shape = 's32[1]{0}', space=sflag, size = 0x4, scoped, tag = 'scoped memory for tpu_custom_call.1']
    #allocation4 [shape = 'u8[8192]{0}', space=vmem, size = 0x2000, scoped, tag = 'output window, operand 1, single buffered']
    #allocation5 [shape = 's32[1]{0}', space=sflag, size = 0x4, scoped, tag = 'scoped memory for tpu_custom_call.1']
    %12 = vsyncpa [#allocation3], 0
    %13 = vsyncpa [#allocation5], 0
    // Predicated region
    $region2: #{tpu_custom_call.1} parent=1 // pred_check
      _
    $region3: #{tpu_custom_call.1} parent=1 // pred_check_branch
      %15 = sbr.rel (0) target = $region5
    $region4: #{tpu_custom_call.1} parent=1 // pred_region
      _
    $region5: #{tpu_custom_call.1} parent=1 // pred_fallthru
      _
    // Predicated region
    $region6: #{tpu_custom_call.1} parent=1 // pred_check
      _
    $region7: #{tpu_custom_call.1} parent=1 // pred_check_branch
      %17 = sbr.rel (0) target = $region9
    $region8: #{tpu_custom_call.1} parent=1 // pred_region
      _
    $region9: #{tpu_custom_call.1} parent=1 // pred_fallthru
      _
    // Predicated region
    $region10: #{tpu_custom_call.1} parent=1 // pred_check
      _
    $region11: #{tpu_custom_call.1} parent=1 // pred_check_branch
      %19 = sbr.rel (0) target = $region13
    $region12: #{tpu_custom_call.1} parent=1 // pred_region
      _
    $region13: #{tpu_custom_call.1} parent=1 // pred_fallthru
      _
    // Predicated region
    $region14: #{tpu_custom_call.1} parent=1 // pred_check
      _
    $region15: #{tpu_custom_call.1} parent=1 // pred_check_branch
      %21 = sbr.rel (0) target = $region17
    $region16: #{tpu_custom_call.1} parent=1 // pred_region
      _
    $region17: #{tpu_custom_call.1} parent=1 // pred_fallthru
      _
    // Predicated region
    $region18: #{tpu_custom_call.1} parent=1 // pred_check
      _
    $region19: #{tpu_custom_call.1} parent=1 // pred_check_branch
      %23 = sbr.rel (0) target = $region21
    $region20: #{tpu_custom_call.1} parent=1 // pred_region
      _
    $region21: #{tpu_custom_call.1} parent=1 // pred_fallthru
      _
    %v24 = vlaneseq
    %v25 = vand.u32 %v24, 127
    %v26 = vld [vmem:[%s0] sm:$0xff]
    %v27 = vld [vmem:[%s0 + $0x8] sm:$0xff]
    %28 = vset.pattern.permute.xlu0 0
    %29 = vperm.xlu0 %28, %v26
    %v30 = vpop.permute.xlu0 %29
    %31 = vset.pattern.permute.xlu0 0
    %32 = vperm.xlu0 %31, %v27
    %v33 = vpop.permute.xlu0 %32
    %vm34 = vcmp.eq.s32.totalorder %v25, %v30
    %vm35 = vcmp.eq.s32.totalorder %v25, %v33
    %v36 = vsel %vm34, 1, 0
    %v37 = vsel %vm35, 1, 0
    %v38 = vcvt.s32.f32 %v36
    %v39 = vcvt.s32.f32 %v37
    %v40 = vld [vmem:[%s3] sm:$0xff]
    %v41 = vld [vmem:[%s3 + $0x8] sm:$0xff]
    %vm42 = vcmask 130048
    %v44 = vsel %vm42, %v38, 0
    %v47 = vsel %vm42, %v39, 0
    %49 = vmatprep.subr.mxu0 0.0
    %50 = vmatpush1.msra.mxu0 %v40
    %51 = vmatprep.subr.mxu0 0.0
    %52 = vmatpush1.msra.mxu0 %v41
    %53 = vmatprep.subr.mxu0 0.0
    %54 = vmatpush1.msra.mxu0 0.0
    %55 = vmatprep.subr.mxu0 0.0
    %56 = vmatpush1.msra.mxu0 0.0
    %57 = vmatprep.subr.mxu0 0.0
    %58 = vmatpush1.msra.mxu0 0.0
    %59 = vmatprep.subr.mxu0 0.0
    %60 = vmatpush1.msra.mxu0 0.0
    %61 = vmatprep.subr.mxu0 0.0
    %62 = vmatpush1.msra.mxu0 0.0
    %63 = vmatprep.subr.mxu0 0.0
    %64 = vmatpush1.msra.mxu0 0.0
    %65 = vmatprep.subr.mxu0 0.0
    %66 = vmatpush1.msra.mxu0 0.0
    %67 = vmatprep.subr.mxu0 0.0
    %68 = vmatpush1.msra.mxu0 0.0
    %69 = vmatprep.subr.mxu0 0.0
    %70 = vmatpush1.msra.mxu0 0.0
    %71 = vmatprep.subr.mxu0 0.0
    %72 = vmatpush1.msra.mxu0 0.0
    %73 = vmatprep.subr.mxu0 0.0
    %74 = vmatpush1.msra.mxu0 0.0
    %75 = vmatprep.subr.mxu0 0.0
    %76 = vmatpush1.msra.mxu0 0.0
    %77 = vmatprep.subr.mxu0 0.0
    %78 = vmatpush1.msra.mxu0 0.0
    %79 = vmatprep.subr.mxu0 0.0
    %80 = vmatpush1.msra.mxu0 0.0
    %81 = vmatprep.subr.mxu0 0.0
    %82 = vmatpush1.msra.mxu0 0.0
    %83 = vmatprep.subr.mxu0 0.0
    %84 = vmatpush1.msra.mxu0 0.0
    %85 = vmatprep.subr.mxu0 0.0
    %86 = vmatpush1.msra.mxu0 0.0
    %87 = vmatprep.subr.mxu0 0.0
    %88 = vmatpush1.msra.mxu0 0.0
    %89 = vmatprep.subr.mxu0 0.0
    %90 = vmatpush1.msra.mxu0 0.0
    %91 = vmatprep.subr.mxu0 0.0
    %92 = vmatpush1.msra.mxu0 0.0
    %93 = vmatprep.subr.mxu0 0.0
    %94 = vmatpush1.msra.mxu0 0.0
    %95 = vmatprep.subr.mxu0 0.0
    %96 = vmatpush1.msra.mxu0 0.0
    %97 = vmatprep.subr.mxu0 0.0
    %98 = vmatpush1.msra.mxu0 0.0
    %99 = vmatprep.subr.mxu0 0.0
    %100 = vmatpush1.msra.mxu0 0.0
    %101 = vmatprep.subr.mxu0 0.0
    %102 = vmatpush1.msra.mxu0 0.0
    %103 = vmatprep.subr.mxu0 0.0
    %104 = vmatpush1.msra.mxu0 0.0
    %105 = vmatprep.subr.mxu0 0.0
    %106 = vmatpush1.msra.mxu0 0.0
    %107 = vmatprep.subr.mxu0 0.0
    %108 = vmatpush1.msra.mxu0 0.0
    %109 = vmatprep.subr.mxu0 0.0
    %110 = vmatpush1.msra.mxu0 0.0
    %111 = vmatprep.subr.mxu0 0.0
    %112 = vmatpush1.msra.mxu0 0.0
    %113 = vmatprep.mubr.f32.mxu0 0.0
    %114 = vmatmul.mubr.f32.gmra.mrb[0].mxu0 %v44
    %v115 = vpop.f32.mrb[0].mxu0
    %v116 = vadd.f32 0.0, %v115
    %v117 = vpop.f32.mrb[0].mxu0
    %118 = vmatprep.mubr.f32.mxu0 0.0
    %119 = vmatmul.mubr.f32.gmra.mrb[0].mxu0 %v47
    %v120 = vpop.f32.mrb[0].mxu0
    %v121 = vadd.f32 0.0, %v120
    %v122 = vpop.f32.mrb[0].mxu0
    %123 = vdwg.mxu0
    %124 = vst.msk [vmem:[#allocation2] sm:$0xff] %vm42, %v116
    %125 = vst.msk [vmem:[#allocation2 + $0x8] sm:$0xff] %vm42, %v121
    %v126 = vld [vmem:[%s1] sm:$0xff]
    %v127 = vld [vmem:[%s1 + $0x8] sm:$0xff]
    %128 = vset.pattern.permute.xlu0 0
    %129 = vperm.xlu0 %128, %v126
    %v130 = vpop.permute.xlu0 %129
    %131 = vset.pattern.permute.xlu0 0
    %132 = vperm.xlu0 %131, %v127
    %v133 = vpop.permute.xlu0 %132
    %vm134 = vcmp.eq.s32.totalorder %v25, %v130
    %vm135 = vcmp.eq.s32.totalorder %v25, %v133
    %v136 = vsel %vm134, 1, 0
    %v137 = vsel %vm135, 1, 0
    %v138 = vcvt.s32.f32 %v136
    %v139 = vcvt.s32.f32 %v137
    %v140 = vld [vmem:[%s4] sm:$0xff]
    %v141 = vld [vmem:[%s4 + $0x8] sm:$0xff]
    %vm142 = vcmask 64512
    %v144 = vsel %vm142, %v138, 0
    %146 = vmatprep.subr.mxu0 0.0
    %147 = vmatpush1.msra.mxu0 %v140
    %148 = vmatprep.subr.mxu0 0.0
    %149 = vmatpush1.msra.mxu0 0.0
    %150 = vmatprep.subr.mxu0 0.0
    %151 = vmatpush1.msra.mxu0 0.0
    %152 = vmatprep.subr.mxu0 0.0
    %153 = vmatpush1.msra.mxu0 0.0
    %154 = vmatprep.subr.mxu0 0.0
    %155 = vmatpush1.msra.mxu0 0.0
    %156 = vmatprep.subr.mxu0 0.0
    %157 = vmatpush1.msra.mxu0 0.0
    %158 = vmatprep.subr.mxu0 0.0
    %159 = vmatpush1.msra.mxu0 0.0
    %160 = vmatprep.subr.mxu0 0.0
    %161 = vmatpush1.msra.mxu0 0.0
    %162 = vmatprep.subr.mxu0 0.0
    %163 = vmatpush1.msra.mxu0 0.0
    %164 = vmatprep.subr.mxu0 0.0
    %165 = vmatpush1.msra.mxu0 0.0
    %166 = vmatprep.subr.mxu0 0.0
    %167 = vmatpush1.msra.mxu0 0.0
    %168 = vmatprep.subr.mxu0 0.0
    %169 = vmatpush1.msra.mxu0 0.0
    %170 = vmatprep.subr.mxu0 0.0
    %171 = vmatpush1.msra.mxu0 0.0
    %172 = vmatprep.subr.mxu0 0.0
    %173 = vmatpush1.msra.mxu0 0.0
    %174 = vmatprep.subr.mxu0 0.0
    %175 = vmatpush1.msra.mxu0 0.0
    %176 = vmatprep.subr.mxu0 0.0
    %177 = vmatpush1.msra.mxu0 0.0
    %178 = vmatprep.subr.mxu0 0.0
    %179 = vmatpush1.msra.mxu0 0.0
    %180 = vmatprep.subr.mxu0 0.0
    %181 = vmatpush1.msra.mxu0 0.0
    %182 = vmatprep.subr.mxu0 0.0
    %183 = vmatpush1.msra.mxu0 0.0
    %184 = vmatprep.subr.mxu0 0.0
    %185 = vmatpush1.msra.mxu0 0.0
    %186 = vmatprep.subr.mxu0 0.0
    %187 = vmatpush1.msra.mxu0 0.0
    %188 = vmatprep.subr.mxu0 0.0
    %189 = vmatpush1.msra.mxu0 0.0
    %190 = vmatprep.subr.mxu0 0.0
    %191 = vmatpush1.msra.mxu0 0.0
    %192 = vmatprep.subr.mxu0 0.0
    %193 = vmatpush1.msra.mxu0 0.0
    %194 = vmatprep.subr.mxu0 0.0
    %195 = vmatpush1.msra.mxu0 0.0
    %196 = vmatprep.subr.mxu0 0.0
    %197 = vmatpush1.msra.mxu0 0.0
    %198 = vmatprep.subr.mxu0 0.0
    %199 = vmatpush1.msra.mxu0 0.0
    %200 = vmatprep.subr.mxu0 0.0
    %201 = vmatpush1.msra.mxu0 0.0
    %202 = vmatprep.subr.mxu0 0.0
    %203 = vmatpush1.msra.mxu0 0.0
    %204 = vmatprep.subr.mxu0 0.0
    %205 = vmatpush1.msra.mxu0 0.0
    %206 = vmatprep.subr.mxu0 0.0
    %207 = vmatpush1.msra.mxu0 0.0
    %208 = vmatprep.subr.mxu0 0.0
    %209 = vmatpush1.msra.mxu0 0.0
    %210 = vmatprep.mubr.f32.mxu0 0.0
    %211 = vmatmul.mubr.f32.gmra.mrb[0].mxu0 %v144
    %v212 = vpop.f32.mrb[0].mxu0
    %v213 = vadd.f32 0.0, %v212
    %v214 = vpop.f32.mrb[0].mxu0
    %215 = vdwg.mxu0
    %v217 = vsel %vm142, %v139, 0
    %219 = vmatprep.subr.mxu0 0.0
    %220 = vmatpush1.msra.mxu0 %v141
    %221 = vmatprep.subr.mxu0 0.0
    %222 = vmatpush1.msra.mxu0 0.0
    %223 = vmatprep.subr.mxu0 0.0
    %224 = vmatpush1.msra.mxu0 0.0
    %225 = vmatprep.subr.mxu0 0.0
    %226 = vmatpush1.msra.mxu0 0.0
    %227 = vmatprep.subr.mxu0 0.0
    %228 = vmatpush1.msra.mxu0 0.0
    %229 = vmatprep.subr.mxu0 0.0
    %230 = vmatpush1.msra.mxu0 0.0
    %231 = vmatprep.subr.mxu0 0.0
    %232 = vmatpush1.msra.mxu0 0.0
    %233 = vmatprep.subr.mxu0 0.0
    %234 = vmatpush1.msra.mxu0 0.0
    %235 = vmatprep.subr.mxu0 0.0
    %236 = vmatpush1.msra.mxu0 0.0
    %237 = vmatprep.subr.mxu0 0.0
    %238 = vmatpush1.msra.mxu0 0.0
    %239 = vmatprep.subr.mxu0 0.0
    %240 = vmatpush1.msra.mxu0 0.0
    %241 = vmatprep.subr.mxu0 0.0
    %242 = vmatpush1.msra.mxu0 0.0
    %243 = vmatprep.subr.mxu0 0.0
    %244 = vmatpush1.msra.mxu0 0.0
    %245 = vmatprep.subr.mxu0 0.0
    %246 = vmatpush1.msra.mxu0 0.0
    %247 = vmatprep.subr.mxu0 0.0
    %248 = vmatpush1.msra.mxu0 0.0
    %249 = vmatprep.subr.mxu0 0.0
    %250 = vmatpush1.msra.mxu0 0.0
    %251 = vmatprep.subr.mxu0 0.0
    %252 = vmatpush1.msra.mxu0 0.0
    %253 = vmatprep.subr.mxu0 0.0
    %254 = vmatpush1.msra.mxu0 0.0
    %255 = vmatprep.subr.mxu0 0.0
    %256 = vmatpush1.msra.mxu0 0.0
    %257 = vmatprep.subr.mxu0 0.0
    %258 = vmatpush1.msra.mxu0 0.0
    %259 = vmatprep.subr.mxu0 0.0
    %260 = vmatpush1.msra.mxu0 0.0
    %261 = vmatprep.subr.mxu0 0.0
    %262 = vmatpush1.msra.mxu0 0.0
    %263 = vmatprep.subr.mxu0 0.0
    %264 = vmatpush1.msra.mxu0 0.0
    %265 = vmatprep.subr.mxu0 0.0
    %266 = vmatpush1.msra.mxu0 0.0
    %267 = vmatprep.subr.mxu0 0.0
    %268 = vmatpush1.msra.mxu0 0.0
    %269 = vmatprep.subr.mxu0 0.0
    %270 = vmatpush1.msra.mxu0 0.0
    %271 = vmatprep.subr.mxu0 0.0
    %272 = vmatpush1.msra.mxu0 0.0
    %273 = vmatprep.subr.mxu0 0.0
    %274 = vmatpush1.msra.mxu0 0.0
    %275 = vmatprep.subr.mxu0 0.0
    %276 = vmatpush1.msra.mxu0 0.0
    %277 = vmatprep.subr.mxu0 0.0
    %278 = vmatpush1.msra.mxu0 0.0
    %279 = vmatprep.subr.mxu0 0.0
    %280 = vmatpush1.msra.mxu0 0.0
    %281 = vmatprep.subr.mxu0 0.0
    %282 = vmatpush1.msra.mxu0 0.0
    %283 = vmatprep.mubr.f32.mxu0 0.0
    %284 = vmatmul.mubr.f32.gmra.mrb[0].mxu0 %v217
    %v285 = vpop.f32.mrb[0].mxu0
    %v286 = vadd.f32 0.0, %v285
    %v287 = vpop.f32.mrb[0].mxu0
    %288 = vdwg.mxu0
    %v289 = vlaneseq
    %v290 = vshrl.u32 %v289, 7
    %v291 = vld [vmem:[%s2] sm:$0x1]
    %v292 = vld [vmem:[%s2 + $0x1] sm:$0x1]
    %v293 = vlaneseq
    %v294 = vshrl.u32 %v293, 7
    %v295 = vsub.s32 0, %v294
    %v296 = vrot.slane %v291, %v295
    %v297 = vlaneseq
    %v298 = vshrl.u32 %v297, 7
    %v299 = vsub.s32 0, %v298
    %v300 = vrot.slane %v292, %v299
    %vm301 = vcmp.eq.s32.totalorder %v290, %v296
    %vm302 = vcmp.eq.s32.totalorder %v290, %v300
    %v303 = vsel %vm301, 1, 0
    %v304 = vsel %vm302, 1, 0
    %v305 = vcvt.s32.f32 %v303
    %v306 = vcvt.s32.f32 %v304
    %v308 = vsel %vm142, %v213, 0
    %310 = vmatprep.subr.mxu0 0.0
    %311 = vmatpush1.msra.mxu0 %v305
    %312 = vmatprep.subr.mxu0 0.0
    %313 = vmatpush1.msra.mxu0 0.0
    %314 = vmatprep.subr.mxu0 0.0
    %315 = vmatpush1.msra.mxu0 0.0
    %316 = vmatprep.subr.mxu0 0.0
    %317 = vmatpush1.msra.mxu0 0.0
    %318 = vmatprep.subr.mxu0 0.0
    %319 = vmatpush1.msra.mxu0 0.0
    %320 = vmatprep.subr.mxu0 0.0
    %321 = vmatpush1.msra.mxu0 0.0
    %322 = vmatprep.subr.mxu0 0.0
    %323 = vmatpush1.msra.mxu0 0.0
    %324 = vmatprep.subr.mxu0 0.0
    %325 = vmatpush1.msra.mxu0 0.0
    %326 = vmatprep.subr.mxu0 0.0
    %327 = vmatpush1.msra.mxu0 0.0
    %328 = vmatprep.subr.mxu0 0.0
    %329 = vmatpush1.msra.mxu0 0.0
    %330 = vmatprep.subr.mxu0 0.0
    %331 = vmatpush1.msra.mxu0 0.0
    %332 = vmatprep.subr.mxu0 0.0
    %333 = vmatpush1.msra.mxu0 0.0
    %334 = vmatprep.subr.mxu0 0.0
    %335 = vmatpush1.msra.mxu0 0.0
    %336 = vmatprep.subr.mxu0 0.0
    %337 = vmatpush1.msra.mxu0 0.0
    %338 = vmatprep.subr.mxu0 0.0
    %339 = vmatpush1.msra.mxu0 0.0
    %340 = vmatprep.subr.mxu0 0.0
    %341 = vmatpush1.msra.mxu0 0.0
    %342 = vmatprep.subr.mxu0 0.0
    %343 = vmatpush1.msra.mxu0 0.0
    %344 = vmatprep.subr.mxu0 0.0
    %345 = vmatpush1.msra.mxu0 0.0
    %346 = vmatprep.subr.mxu0 0.0
    %347 = vmatpush1.msra.mxu0 0.0
    %348 = vmatprep.subr.mxu0 0.0
    %349 = vmatpush1.msra.mxu0 0.0
    %350 = vmatprep.subr.mxu0 0.0
    %351 = vmatpush1.msra.mxu0 0.0
    %352 = vmatprep.subr.mxu0 0.0
    %353 = vmatpush1.msra.mxu0 0.0
    %354 = vmatprep.subr.mxu0 0.0
    %355 = vmatpush1.msra.mxu0 0.0
    %356 = vmatprep.subr.mxu0 0.0
    %357 = vmatpush1.msra.mxu0 0.0
    %358 = vmatprep.subr.mxu0 0.0
    %359 = vmatpush1.msra.mxu0 0.0
    %360 = vmatprep.subr.mxu0 0.0
    %361 = vmatpush1.msra.mxu0 0.0
    %362 = vmatprep.subr.mxu0 0.0
    %363 = vmatpush1.msra.mxu0 0.0
    %364 = vmatprep.subr.mxu0 0.0
    %365 = vmatpush1.msra.mxu0 0.0
    %366 = vmatprep.subr.mxu0 0.0
    %367 = vmatpush1.msra.mxu0 0.0
    %368 = vmatprep.subr.mxu0 0.0
    %369 = vmatpush1.msra.mxu0 0.0
    %370 = vmatprep.subr.mxu0 0.0
    %371 = vmatpush1.msra.mxu0 0.0
    %372 = vmatprep.subr.mxu0 0.0
    %373 = vmatpush1.msra.mxu0 0.0
    %374 = vmatprep.mubr.f32.mxu0 0.0
    %375 = vmatmul.mubr.f32.gmra.mrb[0].mxu0 %v308
    %v376 = vpop.f32.mrb[0].mxu0
    %v377 = vadd.f32 0.0, %v376
    %v378 = vpop.f32.mrb[0].mxu0
    %379 = vdwg.mxu0
    %v381 = vsel %vm142, %v286, 0
    %383 = vmatprep.subr.mxu0 0.0
    %384 = vmatpush1.msra.mxu0 %v306
    %385 = vmatprep.subr.mxu0 0.0
    %386 = vmatpush1.msra.mxu0 0.0
    %387 = vmatprep.subr.mxu0 0.0
    %388 = vmatpush1.msra.mxu0 0.0
    %389 = vmatprep.subr.mxu0 0.0
    %390 = vmatpush1.msra.mxu0 0.0
    %391 = vmatprep.subr.mxu0 0.0
    %392 = vmatpush1.msra.mxu0 0.0
    %393 = vmatprep.subr.mxu0 0.0
    %394 = vmatpush1.msra.mxu0 0.0
    %395 = vmatprep.subr.mxu0 0.0
    %396 = vmatpush1.msra.mxu0 0.0
    %397 = vmatprep.subr.mxu0 0.0
    %398 = vmatpush1.msra.mxu0 0.0
    %399 = vmatprep.subr.mxu0 0.0
    %400 = vmatpush1.msra.mxu0 0.0
    %401 = vmatprep.subr.mxu0 0.0
    %402 = vmatpush1.msra.mxu0 0.0
    %403 = vmatprep.subr.mxu0 0.0
    %404 = vmatpush1.msra.mxu0 0.0
    %405 = vmatprep.subr.mxu0 0.0
    %406 = vmatpush1.msra.mxu0 0.0
    %407 = vmatprep.subr.mxu0 0.0
    %408 = vmatpush1.msra.mxu0 0.0
    %409 = vmatprep.subr.mxu0 0.0
    %410 = vmatpush1.msra.mxu0 0.0
    %411 = vmatprep.subr.mxu0 0.0
    %412 = vmatpush1.msra.mxu0 0.0
    %413 = vmatprep.subr.mxu0 0.0
    %414 = vmatpush1.msra.mxu0 0.0
    %415 = vmatprep.subr.mxu0 0.0
    %416 = vmatpush1.msra.mxu0 0.0
    %417 = vmatprep.subr.mxu0 0.0
    %418 = vmatpush1.msra.mxu0 0.0
    %419 = vmatprep.subr.mxu0 0.0
    %420 = vmatpush1.msra.mxu0 0.0
    %421 = vmatprep.subr.mxu0 0.0
    %422 = vmatpush1.msra.mxu0 0.0
    %423 = vmatprep.subr.mxu0 0.0
    %424 = vmatpush1.msra.mxu0 0.0
    %425 = vmatprep.subr.mxu0 0.0
    %426 = vmatpush1.msra.mxu0 0.0
    %427 = vmatprep.subr.mxu0 0.0
    %428 = vmatpush1.msra.mxu0 0.0
    %429 = vmatprep.subr.mxu0 0.0
    %430 = vmatpush1.msra.mxu0 0.0
    %431 = vmatprep.subr.mxu0 0.0
    %432 = vmatpush1.msra.mxu0 0.0
    %433 = vmatprep.subr.mxu0 0.0
    %434 = vmatpush1.msra.mxu0 0.0
    %435 = vmatprep.subr.mxu0 0.0
    %436 = vmatpush1.msra.mxu0 0.0
    %437 = vmatprep.subr.mxu0 0.0
    %438 = vmatpush1.msra.mxu0 0.0
    %439 = vmatprep.subr.mxu0 0.0
    %440 = vmatpush1.msra.mxu0 0.0
    %441 = vmatprep.subr.mxu0 0.0
    %442 = vmatpush1.msra.mxu0 0.0
    %443 = vmatprep.subr.mxu0 0.0
    %444 = vmatpush1.msra.mxu0 0.0
    %445 = vmatprep.subr.mxu0 0.0
    %446 = vmatpush1.msra.mxu0 0.0
    %447 = vmatprep.mubr.f32.mxu0 0.0
    %448 = vmatmul.mubr.f32.gmra.mrb[0].mxu0 %v381
    %v449 = vpop.f32.mrb[0].mxu0
    %v450 = vadd.f32 0.0, %v449
    %v451 = vpop.f32.mrb[0].mxu0
    %452 = vdwg.mxu0
    %453 = vst.msk [vmem:[#allocation4] sm:$0xff] %vm142, %v377
    %454 = vst.msk [vmem:[#allocation4 + $0x8] sm:$0xff] %vm142, %v450
    // Predicated region
    $region22: #{tpu_custom_call.1} parent=1 // pred_check
      _
    $region23: #{tpu_custom_call.1} parent=1 // pred_check_branch
      %456 = sbr.rel (0) target = $region25
    $region24: #{tpu_custom_call.1} parent=1 // pred_region
      %s458 = ssub.s32 256, 256
      %459 = vsyncadd [#allocation3], %s458
      %s460 = sshll.u32 [#allocation2], 4
      %s461 = int_to_ptr.vmem [resolvable:$true] %s460
      %466 = dma.vmem_to_hbm [thread:$0]  %s461, 256, %s5, [#allocation3], 128, 128, 8
    $region25: #{tpu_custom_call.1} parent=1 // pred_fallthru
      _
    // Predicated region
    $region26: #{tpu_custom_call.1} parent=1 // pred_check
      _
    $region27: #{tpu_custom_call.1} parent=1 // pred_check_branch
      %468 = sbr.rel (0) target = $region29
    $region28: #{tpu_custom_call.1} parent=1 // pred_region
      %s470 = ssub.s32 256, 256
      %471 = vsyncadd [#allocation5], %s470
      %s472 = sshll.u32 [#allocation4], 4
      %s473 = int_to_ptr.vmem [resolvable:$true] %s472
      %478 = dma.vmem_to_hbm [thread:$0]  %s473, 256, %s6, [#allocation5], 128, 128, 8
    $region29: #{tpu_custom_call.1} parent=1 // pred_fallthru
      _
    // Predicated region
    $region30: #{tpu_custom_call.1} parent=1 // pred_check
      _
    $region31: #{tpu_custom_call.1} parent=1 // pred_check_branch
      %480 = sbr.rel (0) target = $region33
    $region32: #{tpu_custom_call.1} parent=1 // pred_region
      %481 = dma.done [#allocation3], 256
    $region33: #{tpu_custom_call.1} parent=1 // pred_fallthru
      _
    // Predicated region
    $region34: #{tpu_custom_call.1} parent=1 // pred_check
      _
    $region35: #{tpu_custom_call.1} parent=1 // pred_check_branch
      %483 = sbr.rel (0) target = $region37
    $region36: #{tpu_custom_call.1} parent=1 // pred_region
      %484 = dma.done [#allocation5], 256
    $region37: #{tpu_custom_call.1} parent=1 // pred_fallthru
      _
    %485 = vsyncpa [#allocation3], 1
    %486 = vsyncpa [#allocation5], 1

</llo_original>
